<compile_context>
chip_gen: v7x
topology: tpu7x:2x2x1
jax: 0.10.0
libtpu: 0.0.40
codegen_flags: <defaults>
</compile_context>

<pallas_src>
import jax
import jax.numpy as jnp
from jax.experimental import pallas as pl
from jax.experimental.pallas import tpu as pltpu

# ----------------------- synthetic config (matches __init__ shapes) ----------
EMBEDDING_DIM  = 32
FFNN_SIZE      = 8      # ffnn gets (FFNN_SIZE - 1) hidden Linear+ReLU blocks
FFNN_DEPTH     = 2      # width_ffnn gets (FFNN_DEPTH - 1) hidden blocks
FEATURE_SIZE   = 16
MAX_SPAN_WIDTH = 10
USE_PRIOR      = True
DROPOUT_RATE   = 0.1    # identity at inference

N_HIDDEN_FFNN  = FFNN_SIZE  - 1   # 7
N_HIDDEN_WIDTH = FFNN_DEPTH - 1   # 1

NUM_SPANS = 256

# ----------------------- packed-constant layout (one buffer, one DMA) --------
PACK_COLS = 128
_ROW_L0   = 0                                   # W0^T (F,E) cols[0:E), b0 at col E
def _ROW_HID(l):                                # Wh[l]^T (F,F) cols[0:F), bh at col F
    return FFNN_SIZE * (1 + l)
_ROW_OUT  = FFNN_SIZE * (1 + N_HIDDEN_FFNN)     # Wo^T (1,F) cols[0:F), bo at col F
_ROW_WT   = _ROW_OUT + 1                        # width-prior table (1,W) cols[0:W)
PACK_ROWS = ((_ROW_WT + 1 + 7) // 8) * 8        # pad to a sublane multiple (72)


# ----------------------------- fused kernel ----------------------------------
def span_score_kernel(embt_ref, idx_ref, pack_ref, out_ref):
    tile = idx_ref.shape[1]

    # ---- main FFNN, spans-on-lanes: activations are (FFNN_SIZE, tile) -------
    w0t = pack_ref[_ROW_L0:_ROW_L0 + FFNN_SIZE, 0:EMBEDDING_DIM]            # (F, E)
    b0t = pack_ref[_ROW_L0:_ROW_L0 + FFNN_SIZE,
                   EMBEDDING_DIM:EMBEDDING_DIM + 1]                          # (F, 1)
    h = jnp.maximum(
        jnp.dot(w0t, embt_ref[...], preferred_element_type=jnp.float32) + b0t,
        0.0)                                                                 # (F, tile)
    for l in range(N_HIDDEN_FFNN):                                           # static unroll
        r = _ROW_HID(l)
        wht = pack_ref[r:r + FFNN_SIZE, 0:FFNN_SIZE]                         # (F, F)
        bht = pack_ref[r:r + FFNN_SIZE, FFNN_SIZE:FFNN_SIZE + 1]             # (F, 1)
        h = jnp.maximum(
            jnp.dot(wht, h, preferred_element_type=jnp.float32) + bht, 0.0)
    wot = pack_ref[_ROW_OUT:_ROW_OUT + 1, 0:FFNN_SIZE]                       # (1, F)
    bot = pack_ref[_ROW_OUT:_ROW_OUT + 1, FFNN_SIZE:FFNN_SIZE + 1]           # (1, 1)
    scores = jnp.dot(wot, h, preferred_element_type=jnp.float32) + bot       # (1, tile)

    # ---- width prior gather on the MXU: (1,W) @ onehot(W,tile) --------------
    wt_row = pack_ref[_ROW_WT:_ROW_WT + 1, 0:MAX_SPAN_WIDTH]                 # (1, W)
    iota = jax.lax.broadcasted_iota(jnp.int32, (MAX_SPAN_WIDTH, tile), 0)
    onehot = (iota == idx_ref[...]).astype(jnp.float32)                      # (W, tile)
    width = jnp.dot(wt_row, onehot, preferred_element_type=jnp.float32)      # (1, tile)

    out_ref[...] = scores + width                                            # lane-dense store


# ----------------------------- wrapper ----------------------------------------
def _mlp(x, params):
    w0, b0, wh, bh, wo, bo = params
    h = jax.nn.relu(x @ w0 + b0)
    for l in range(wh.shape[0]):
        h = jax.nn.relu(h @ wh[l] + bh[l])
    return h @ wo + bo


def _pack_constants(ffnn_params, wt):
    """Pack all kernel constants into one (PACK_ROWS, 128) f32 buffer."""
    w0, b0, wh, bh, wo, bo = ffnn_params
    pack = jnp.zeros((PACK_ROWS, PACK_COLS), jnp.float32)
    pack = pack.at[_ROW_L0:_ROW_L0 + FFNN_SIZE, 0:EMBEDDING_DIM].set(w0.T)
    pack = pack.at[_ROW_L0:_ROW_L0 + FFNN_SIZE, EMBEDDING_DIM].set(b0.reshape(-1))
    for l in range(N_HIDDEN_FFNN):
        r = _ROW_HID(l)
        pack = pack.at[r:r + FFNN_SIZE, 0:FFNN_SIZE].set(wh[l].T)
        pack = pack.at[r:r + FFNN_SIZE, FFNN_SIZE].set(bh[l].reshape(-1))
    pack = pack.at[_ROW_OUT, 0:FFNN_SIZE].set(wo.reshape(-1))
    pack = pack.at[_ROW_OUT, FFNN_SIZE].set(bo.reshape(-1)[0])
    pack = pack.at[_ROW_WT, 0:MAX_SPAN_WIDTH].set(wt.reshape(-1))
    return pack


def _pick_tiling(n):
    """Small n: one grid step (per-step overhead dominates; a megacore split
    at this size costs as much as it saves).  Large n: largest lane-aligned
    tile with an even tile count so both v7x TensorCores get equal work while
    the double-buffered (32, tile) emb block stays a few MiB."""
    if n <= 2048:
        return n, 1
    for t in (8192, 4096, 2048, 1024, 512):
        nt = pl.cdiv(n, t)
        if nt % 2 == 0:
            return t, nt
    return 2048, pl.cdiv(n, 2048)


def mention_scores(span_emb, span_starts, span_ends, ffnn_params, width_params,
                   span_width_emb):
    n = span_emb.shape[0]
    tile_n, num_tiles = _pick_tiling(n)
    n_pad = tile_n * num_tiles

    # width prior table (10,1): tiny MLP, computed once in plain XLA
    if USE_PRIOR:
        wt = _mlp(span_width_emb, width_params)
    else:
        wt = jnp.zeros((MAX_SPAN_WIDTH, 1), jnp.float32)
    pack = _pack_constants(ffnn_params, wt)

    # spans-on-lanes embedding: pre-transpose once (no in-kernel XLU transpose)
    embt = span_emb.T.astype(jnp.float32)                                    # (E, n)
    # lane-dense width index; clamp matches JAX-gather OOB semantics
    width_idx = jnp.clip((span_ends - span_starts).astype(jnp.int32),
                         0, MAX_SPAN_WIDTH - 1).reshape(1, n)
    if n_pad != n:
        embt = jnp.pad(embt, ((0, 0), (0, n_pad - n)))
        width_idx = jnp.pad(width_idx, ((0, 0), (0, n_pad - n)))

    out_row = pl.pallas_call(
        span_score_kernel,
        out_shape=jax.ShapeDtypeStruct((1, n_pad), jnp.float32),
        grid=(num_tiles,),
        in_specs=[
            pl.BlockSpec((EMBEDDING_DIM, tile_n), lambda i: (0, i)),  # emb^T tile
            pl.BlockSpec((1, tile_n), lambda i: (0, i)),              # width idx
            pl.BlockSpec((PACK_ROWS, PACK_COLS), lambda i: (0, 0)),   # packed consts
        ],
        out_specs=pl.BlockSpec((1, tile_n), lambda i: (0, i)),        # lane-dense out
        compiler_params=pltpu.CompilerParams(dimension_semantics=("parallel",)),
    )(embt, width_idx, pack)

    return out_row[:, :n].reshape(n, 1)


mention_scores_jit = jax.jit(mention_scores)


# ----------------------------- reference (pure JAX) ----------------------------
def reference(span_emb, span_starts, span_ends, ffnn_params, width_params,
              span_width_emb):
    scores = _mlp(span_emb, ffnn_params)                   # [N, 1]
    if USE_PRIOR:
        wt = _mlp(span_width_emb, width_params)            # [W, 1]
        scores = scores + wt[span_ends - span_starts]      # gather -> [N, 1]
    return scores


# ----------------------------- main --------------------------------------------
def _init_mlp(key, in_dim, hid, n_hidden, scale=0.02):
    ks = jax.random.split(key, 6)
    w0 = jax.random.normal(ks[0], (in_dim, hid), jnp.float32) * scale
    b0 = jax.random.normal(ks[1], (1, hid), jnp.float32) * scale
    wh = jax.random.normal(ks[2], (n_hidden, hid, hid), jnp.float32) * scale
    bh = jax.random.normal(ks[3], (n_hidden, 1, hid), jnp.float32) * scale
    wo = jax.random.normal(ks[4], (hid, 1), jnp.float32) * scale
    bo = jax.random.normal(ks[5], (1, 1), jnp.float32) * scale
    return (w0, b0, wh, bh, wo, bo)


if __name__ == "__main__":
    key = jax.random.PRNGKey(0)
    k_emb, k_ffnn, k_wffnn, k_wemb, k_start, k_width = jax.random.split(key, 6)

    span_emb = jax.random.normal(k_emb, (NUM_SPANS, EMBEDDING_DIM), jnp.float32)
    span_starts = jax.random.randint(k_start, (NUM_SPANS,), 0, 50, jnp.int32)
    widths = jax.random.randint(k_width, (NUM_SPANS,), 0, MAX_SPAN_WIDTH, jnp.int32)
    span_ends = span_starts + widths

    ffnn_params = _init_mlp(k_ffnn, EMBEDDING_DIM, FFNN_SIZE, N_HIDDEN_FFNN)
    width_params = _init_mlp(k_wffnn, FEATURE_SIZE, FFNN_SIZE, N_HIDDEN_WIDTH)
    span_width_emb = jax.random.normal(
        k_wemb, (MAX_SPAN_WIDTH, FEATURE_SIZE), jnp.float32) * 0.02

    out = mention_scores_jit(span_emb, span_starts, span_ends, ffnn_params,
                             width_params, span_width_emb)
    out = jax.block_until_ready(out)

    ref = reference(span_emb, span_starts, span_ends, ffnn_params,
                    width_params, span_width_emb)
    assert out.shape == (NUM_SPANS, 1)
    assert jnp.allclose(out, ref, rtol=1e-3, atol=1e-4), (
        float(jnp.max(jnp.abs(out - ref))))

    print("KERNEL_OK")
</pallas_src>

<mosaic_0001>
module attributes {stable_mosaic.version = 11 : i64} {
  func.func @span_score_kernel(%arg0: i32, %arg1: memref<32x256xf32, #tpu.memory_space<vmem>>, %arg2: memref<1x256xi32, #tpu.memory_space<vmem>>, %arg3: memref<72x128xf32, #tpu.memory_space<vmem>>, %arg4: memref<1x256xf32, #tpu.memory_space<vmem>>) attributes {dimension_semantics = [#tpu.dimension_semantics<parallel>], iteration_bounds = array<i64: 1>, scalar_prefetch = 0 : i64, scratch_operands = 0 : i64, tpu.core_type = #tpu.core_type<tc>, window_params = [{transform_indices = @transform_0, window_bounds = array<i64: 32, 256>}, {transform_indices = @transform_1, window_bounds = array<i64: 1, 256>}, {pipeline_mode = #tpu.pipeline_mode<synchronous>, transform_indices = @transform_2, window_bounds = array<i64: 72, 128>}, {transform_indices = @transform_3, window_bounds = array<i64: 1, 256>}]} {
    %c0 = arith.constant 0 : index
    %c0_0 = arith.constant 0 : index
    %0 = vector.load %arg3[%c0, %c0_0] : memref<72x128xf32, #tpu.memory_space<vmem>>, vector<8x32xf32>
    %c0_1 = arith.constant 0 : index
    %c32 = arith.constant 32 : index
    %1 = vector.load %arg3[%c0_1, %c32] : memref<72x128xf32, #tpu.memory_space<vmem>>, vector<8x1xf32>
    %c0_2 = arith.constant 0 : index
    %c0_3 = arith.constant 0 : index
    %2 = vector.load %arg1[%c0_2, %c0_3] : memref<32x256xf32, #tpu.memory_space<vmem>>, vector<32x256xf32>
    %cst = arith.constant dense<0.000000e+00> : vector<8x256xf32>
    %3 = tpu.matmul %0, %2, %cst {dimension_numbers = #tpu.dot_dimension_numbers<[1], [0], [0], [1], [0, 0, 1, 1], [], []>} : vector<8x32xf32>, vector<32x256xf32>, vector<8x256xf32> -> vector<8x256xf32>
    %4 = vector.broadcast %1 : vector<8x1xf32> to vector<8x256xf32>
    %5 = arith.addf %3, %4 : vector<8x256xf32>
    %cst_4 = arith.constant 0.000000e+00 : f32
    %6 = vector.broadcast %cst_4 : f32 to vector<8x256xf32>
    %7 = arith.maximumf %5, %6 : vector<8x256xf32>
    %c8 = arith.constant 8 : index
    %c0_5 = arith.constant 0 : index
    %8 = vector.load %arg3[%c8, %c0_5] : memref<72x128xf32, #tpu.memory_space<vmem>>, vector<8x8xf32>
    %c8_6 = arith.constant 8 : index
    %c8_7 = arith.constant 8 : index
    %9 = vector.load %arg3[%c8_6, %c8_7] : memref<72x128xf32, #tpu.memory_space<vmem>>, vector<8x1xf32>
    %cst_8 = arith.constant dense<0.000000e+00> : vector<8x256xf32>
    %10 = tpu.matmul %8, %7, %cst_8 {dimension_numbers = #tpu.dot_dimension_numbers<[1], [0], [0], [1], [0, 0, 1, 1], [], []>} : vector<8x8xf32>, vector<8x256xf32>, vector<8x256xf32> -> vector<8x256xf32>
    %11 = vector.broadcast %9 : vector<8x1xf32> to vector<8x256xf32>
    %12 = arith.addf %10, %11 : vector<8x256xf32>
    %cst_9 = arith.constant 0.000000e+00 : f32
    %13 = vector.broadcast %cst_9 : f32 to vector<8x256xf32>
    %14 = arith.maximumf %12, %13 : vector<8x256xf32>
    %c16 = arith.constant 16 : index
    %c0_10 = arith.constant 0 : index
    %15 = vector.load %arg3[%c16, %c0_10] : memref<72x128xf32, #tpu.memory_space<vmem>>, vector<8x8xf32>
    %c16_11 = arith.constant 16 : index
    %c8_12 = arith.constant 8 : index
    %16 = vector.load %arg3[%c16_11, %c8_12] : memref<72x128xf32, #tpu.memory_space<vmem>>, vector<8x1xf32>
    %cst_13 = arith.constant dense<0.000000e+00> : vector<8x256xf32>
    %17 = tpu.matmul %15, %14, %cst_13 {dimension_numbers = #tpu.dot_dimension_numbers<[1], [0], [0], [1], [0, 0, 1, 1], [], []>} : vector<8x8xf32>, vector<8x256xf32>, vector<8x256xf32> -> vector<8x256xf32>
    %18 = vector.broadcast %16 : vector<8x1xf32> to vector<8x256xf32>
    %19 = arith.addf %17, %18 : vector<8x256xf32>
    %cst_14 = arith.constant 0.000000e+00 : f32
    %20 = vector.broadcast %cst_14 : f32 to vector<8x256xf32>
    %21 = arith.maximumf %19, %20 : vector<8x256xf32>
    %c24 = arith.constant 24 : index
    %c0_15 = arith.constant 0 : index
    %22 = vector.load %arg3[%c24, %c0_15] : memref<72x128xf32, #tpu.memory_space<vmem>>, vector<8x8xf32>
    %c24_16 = arith.constant 24 : index
    %c8_17 = arith.constant 8 : index
    %23 = vector.load %arg3[%c24_16, %c8_17] : memref<72x128xf32, #tpu.memory_space<vmem>>, vector<8x1xf32>
    %cst_18 = arith.constant dense<0.000000e+00> : vector<8x256xf32>
    %24 = tpu.matmul %22, %21, %cst_18 {dimension_numbers = #tpu.dot_dimension_numbers<[1], [0], [0], [1], [0, 0, 1, 1], [], []>} : vector<8x8xf32>, vector<8x256xf32>, vector<8x256xf32> -> vector<8x256xf32>
    %25 = vector.broadcast %23 : vector<8x1xf32> to vector<8x256xf32>
    %26 = arith.addf %24, %25 : vector<8x256xf32>
    %cst_19 = arith.constant 0.000000e+00 : f32
    %27 = vector.broadcast %cst_19 : f32 to vector<8x256xf32>
    %28 = arith.maximumf %26, %27 : vector<8x256xf32>
    %c32_20 = arith.constant 32 : index
    %c0_21 = arith.constant 0 : index
    %29 = vector.load %arg3[%c32_20, %c0_21] : memref<72x128xf32, #tpu.memory_space<vmem>>, vector<8x8xf32>
    %c32_22 = arith.constant 32 : index
    %c8_23 = arith.constant 8 : index
    %30 = vector.load %arg3[%c32_22, %c8_23] : memref<72x128xf32, #tpu.memory_space<vmem>>, vector<8x1xf32>
    %cst_24 = arith.constant dense<0.000000e+00> : vector<8x256xf32>
    %31 = tpu.matmul %29, %28, %cst_24 {dimension_numbers = #tpu.dot_dimension_numbers<[1], [0], [0], [1], [0, 0, 1, 1], [], []>} : vector<8x8xf32>, vector<8x256xf32>, vector<8x256xf32> -> vector<8x256xf32>
    %32 = vector.broadcast %30 : vector<8x1xf32> to vector<8x256xf32>
    %33 = arith.addf %31, %32 : vector<8x256xf32>
    %cst_25 = arith.constant 0.000000e+00 : f32
    %34 = vector.broadcast %cst_25 : f32 to vector<8x256xf32>
    %35 = arith.maximumf %33, %34 : vector<8x256xf32>
    %c40 = arith.constant 40 : index
    %c0_26 = arith.constant 0 : index
    %36 = vector.load %arg3[%c40, %c0_26] : memref<72x128xf32, #tpu.memory_space<vmem>>, vector<8x8xf32>
    %c40_27 = arith.constant 40 : index
    %c8_28 = arith.constant 8 : index
    %37 = vector.load %arg3[%c40_27, %c8_28] : memref<72x128xf32, #tpu.memory_space<vmem>>, vector<8x1xf32>
    %cst_29 = arith.constant dense<0.000000e+00> : vector<8x256xf32>
    %38 = tpu.matmul %36, %35, %cst_29 {dimension_numbers = #tpu.dot_dimension_numbers<[1], [0], [0], [1], [0, 0, 1, 1], [], []>} : vector<8x8xf32>, vector<8x256xf32>, vector<8x256xf32> -> vector<8x256xf32>
    %39 = vector.broadcast %37 : vector<8x1xf32> to vector<8x256xf32>
    %40 = arith.addf %38, %39 : vector<8x256xf32>
    %cst_30 = arith.constant 0.000000e+00 : f32
    %41 = vector.broadcast %cst_30 : f32 to vector<8x256xf32>
    %42 = arith.maximumf %40, %41 : vector<8x256xf32>
    %c48 = arith.constant 48 : index
    %c0_31 = arith.constant 0 : index
    %43 = vector.load %arg3[%c48, %c0_31] : memref<72x128xf32, #tpu.memory_space<vmem>>, vector<8x8xf32>
    %c48_32 = arith.constant 48 : index
    %c8_33 = arith.constant 8 : index
    %44 = vector.load %arg3[%c48_32, %c8_33] : memref<72x128xf32, #tpu.memory_space<vmem>>, vector<8x1xf32>
    %cst_34 = arith.constant dense<0.000000e+00> : vector<8x256xf32>
    %45 = tpu.matmul %43, %42, %cst_34 {dimension_numbers = #tpu.dot_dimension_numbers<[1], [0], [0], [1], [0, 0, 1, 1], [], []>} : vector<8x8xf32>, vector<8x256xf32>, vector<8x256xf32> -> vector<8x256xf32>
    %46 = vector.broadcast %44 : vector<8x1xf32> to vector<8x256xf32>
    %47 = arith.addf %45, %46 : vector<8x256xf32>
    %cst_35 = arith.constant 0.000000e+00 : f32
    %48 = vector.broadcast %cst_35 : f32 to vector<8x256xf32>
    %49 = arith.maximumf %47, %48 : vector<8x256xf32>
    %c56 = arith.constant 56 : index
    %c0_36 = arith.constant 0 : index
    %50 = vector.load %arg3[%c56, %c0_36] : memref<72x128xf32, #tpu.memory_space<vmem>>, vector<8x8xf32>
    %c56_37 = arith.constant 56 : index
    %c8_38 = arith.constant 8 : index
    %51 = vector.load %arg3[%c56_37, %c8_38] : memref<72x128xf32, #tpu.memory_space<vmem>>, vector<8x1xf32>
    %cst_39 = arith.constant dense<0.000000e+00> : vector<8x256xf32>
    %52 = tpu.matmul %50, %49, %cst_39 {dimension_numbers = #tpu.dot_dimension_numbers<[1], [0], [0], [1], [0, 0, 1, 1], [], []>} : vector<8x8xf32>, vector<8x256xf32>, vector<8x256xf32> -> vector<8x256xf32>
    %53 = vector.broadcast %51 : vector<8x1xf32> to vector<8x256xf32>
    %54 = arith.addf %52, %53 : vector<8x256xf32>
    %cst_40 = arith.constant 0.000000e+00 : f32
    %55 = vector.broadcast %cst_40 : f32 to vector<8x256xf32>
    %56 = arith.maximumf %54, %55 : vector<8x256xf32>
    %c64 = arith.constant 64 : index
    %c0_41 = arith.constant 0 : index
    %57 = vector.load %arg3[%c64, %c0_41] : memref<72x128xf32, #tpu.memory_space<vmem>>, vector<1x8xf32>
    %c64_42 = arith.constant 64 : index
    %c8_43 = arith.constant 8 : index
    %58 = vector.load %arg3[%c64_42, %c8_43] : memref<72x128xf32, #tpu.memory_space<vmem>>, vector<1x1xf32>
    %cst_44 = arith.constant dense<0.000000e+00> : vector<1x256xf32>
    %59 = tpu.matmul %57, %56, %cst_44 {dimension_numbers = #tpu.dot_dimension_numbers<[1], [0], [0], [1], [0, 0, 1, 1], [], []>} : vector<1x8xf32>, vector<8x256xf32>, vector<1x256xf32> -> vector<1x256xf32>
    %60 = vector.broadcast %58 : vector<1x1xf32> to vector<1x256xf32>
    %61 = arith.addf %59, %60 : vector<1x256xf32>
    %c65 = arith.constant 65 : index
    %c0_45 = arith.constant 0 : index
    %62 = vector.load %arg3[%c65, %c0_45] : memref<72x128xf32, #tpu.memory_space<vmem>>, vector<1x10xf32>
    %63 = tpu.iota {dimensions = array<i32: 0>} : vector<10x256xi32>
    %c0_46 = arith.constant 0 : index
    %c0_47 = arith.constant 0 : index
    %64 = vector.load %arg2[%c0_46, %c0_47] : memref<1x256xi32, #tpu.memory_space<vmem>>, vector<1x256xi32>
    %65 = vector.broadcast %64 : vector<1x256xi32> to vector<10x256xi32>
    %66 = arith.cmpi eq, %63, %65 : vector<10x256xi32>
    %67 = arith.extui %66 : vector<10x256xi1> to vector<10x256xi32>
    %68 = arith.sitofp %67 : vector<10x256xi32> to vector<10x256xf32>
    %cst_48 = arith.constant dense<0.000000e+00> : vector<1x256xf32>
    %69 = tpu.matmul %62, %68, %cst_48 {dimension_numbers = #tpu.dot_dimension_numbers<[1], [0], [0], [1], [0, 0, 1, 1], [], []>} : vector<1x10xf32>, vector<10x256xf32>, vector<1x256xf32> -> vector<1x256xf32>
    %70 = arith.addf %61, %69 : vector<1x256xf32>
    %c0_49 = arith.constant 0 : index
    %c0_50 = arith.constant 0 : index
    %71 = vector.load %arg4[%c0_49, %c0_50] : memref<1x256xf32, #tpu.memory_space<vmem>>, vector<1x256xf32>
    tpu.vector_store %arg4[%c0_49, %c0_50], %70 {strides = array<i32>} : memref<1x256xf32, #tpu.memory_space<vmem>>, vector<1x256xf32>,
    return
  }
  func.func @transform_0(%arg0: i32) -> (i32, i32) {
    %c0_i32 = arith.constant 0 : i32
    %c0_i32_0 = arith.constant 0 : i32
    return %c0_i32, %arg0 : i32, i32
  }
  func.func @transform_1(%arg0: i32) -> (i32, i32) {
    %c0_i32 = arith.constant 0 : i32
    %c0_i32_0 = arith.constant 0 : i32
    return %c0_i32, %arg0 : i32, i32
  }
  func.func @transform_2(%arg0: i32) -> (i32, i32) {
    %c0_i32 = arith.constant 0 : i32
    %c0_i32_0 = arith.constant 0 : i32
    %c0_i32_1 = arith.constant 0 : i32
    return %c0_i32, %c0_i32_0 : i32, i32
  }
  func.func @transform_3(%arg0: i32) -> (i32, i32) {
    %c0_i32 = arith.constant 0 : i32
    %c0_i32_0 = arith.constant 0 : i32
    return %c0_i32, %arg0 : i32, i32
  }
}

</mosaic_0001>

<llo_original>
// kernel: mention_scores.1
$region0: #{mention_scores.1}
  #allocation0 [shape = 'u32[]', space=smem, size = 0x4, offset = 0x4, fixed_abs, tag = 'smem constant byte address 0x4 - core index']
  #allocation1 [shape = 'u32[144,128]{1,0:T(1,128)}', space=vmem, size = 0x12000, scoped, tag = 'internal scratch']
  %s0 = inlined_call_operand.vmem [shape: f32[32,256], index: 0, kind: input, shape index: {}]
  %s1 = inlined_call_operand.vmem [shape: s32[1,256], index: 1, kind: input, shape index: {}]
  %s2 = inlined_call_operand.vmem [shape: f32[72,128], index: 2, kind: input, shape index: {}]
  %s3 = inlined_call_operand.hbm [shape: f32[1,256], index: 3, kind: output, shape index: {}]
  %s4 = sld [smem:[#allocation0]]
  $region22: #{mention_scores.1} parent=0
    _
  %s6 = ssub.s32 1, %s4
  %s7 = scalar_select 0, %s6, %s4
  $region1: #{mention_scores.1} parent=0
    #allocation2 [shape = 'u8[1024]{0}', space=vmem, size = 0x400, scoped, tag = 'output window, operand 0, single buffered']
    #allocation3 [shape = 's32[1]{0}', space=sflag, size = 0x4, scoped, tag = 'scoped memory for mention_scores.1']
    %8 = vsyncpa [#allocation3], 0
    // Predicated region
    $region2: #{mention_scores.1} parent=1 // pred_check
      _
    $region3: #{mention_scores.1} parent=1 // pred_check_branch
      %10 = sbr.rel (0) target = $region5
    $region4: #{mention_scores.1} parent=1 // pred_region
      _
    $region5: #{mention_scores.1} parent=1 // pred_fallthru
      _
    // Predicated region
    $region6: #{mention_scores.1} parent=1 // pred_check
      _
    $region7: #{mention_scores.1} parent=1 // pred_check_branch
      %12 = sbr.rel (0) target = $region9
    $region8: #{mention_scores.1} parent=1 // pred_region
      _
    $region9: #{mention_scores.1} parent=1 // pred_fallthru
      _
    // Predicated region
    $region10: #{mention_scores.1} parent=1 // pred_check
      _
    $region11: #{mention_scores.1} parent=1 // pred_check_branch
      %14 = sbr.rel (0) target = $region13
    $region12: #{mention_scores.1} parent=1 // pred_region
      _
    $region13: #{mention_scores.1} parent=1 // pred_fallthru
      _
    %v15 = vld [vmem:[%s2] sm:$0xff]
    %v16 = vld [vmem:[%s0] sm:$0xff]
    %v17 = vld [vmem:[%s0 + $0x8] sm:$0xff]
    %v18 = vld [vmem:[%s0 + $0x10] sm:$0xff]
    %v19 = vld [vmem:[%s0 + $0x18] sm:$0xff]
    %v20 = vld [vmem:[%s0 + $0x20] sm:$0xff]
    %v21 = vld [vmem:[%s0 + $0x28] sm:$0xff]
    %v22 = vld [vmem:[%s0 + $0x30] sm:$0xff]
    %v23 = vld [vmem:[%s0 + $0x38] sm:$0xff]
    %25 = vset.pattern.permute.xlu0 32
    %26 = vperm.xlu0 %25, %v15
    %v27 = vpop.permute.xlu0 %26
    %vm29 = vcmask 261120
    %v30 = vsel %vm29, %v15, 0
    %32 = vmatprep.subr.mxu0 %v17
    %33 = vmatpush1.msra.mxu0 %v16
    %34 = vmatprep.subr.mxu0 %v19
    %35 = vmatpush1.msra.mxu0 %v18
    %36 = vmatprep.subr.mxu0 %v21
    %37 = vmatpush1.msra.mxu0 %v20
    %38 = vmatprep.subr.mxu0 %v23
    %39 = vmatpush1.msra.mxu0 %v22
    %40 = vmatprep.subr.mxu0 0.0
    %41 = vmatpush1.msra.mxu0 0.0
    %42 = vmatprep.subr.mxu0 0.0
    %43 = vmatpush1.msra.mxu0 0.0
    %44 = vmatprep.subr.mxu0 0.0
    %45 = vmatpush1.msra.mxu0 0.0
    %46 = vmatprep.subr.mxu0 0.0
    %47 = vmatpush1.msra.mxu0 0.0
    %48 = vmatprep.subr.mxu0 0.0
    %49 = vmatpush1.msra.mxu0 0.0
    %50 = vmatprep.subr.mxu0 0.0
    %51 = vmatpush1.msra.mxu0 0.0
    %52 = vmatprep.subr.mxu0 0.0
    %53 = vmatpush1.msra.mxu0 0.0
    %54 = vmatprep.subr.mxu0 0.0
    %55 = vmatpush1.msra.mxu0 0.0
    %56 = vmatprep.subr.mxu0 0.0
    %57 = vmatpush1.msra.mxu0 0.0
    %58 = vmatprep.subr.mxu0 0.0
    %59 = vmatpush1.msra.mxu0 0.0
    %60 = vmatprep.subr.mxu0 0.0
    %61 = vmatpush1.msra.mxu0 0.0
    %62 = vmatprep.subr.mxu0 0.0
    %63 = vmatpush1.msra.mxu0 0.0
    %64 = vmatprep.subr.mxu0 0.0
    %65 = vmatpush1.msra.mxu0 0.0
    %66 = vmatprep.subr.mxu0 0.0
    %67 = vmatpush1.msra.mxu0 0.0
    %68 = vmatprep.subr.mxu0 0.0
    %69 = vmatpush1.msra.mxu0 0.0
    %70 = vmatprep.subr.mxu0 0.0
    %71 = vmatpush1.msra.mxu0 0.0
    %72 = vmatprep.subr.mxu0 0.0
    %73 = vmatpush1.msra.mxu0 0.0
    %74 = vmatprep.subr.mxu0 0.0
    %75 = vmatpush1.msra.mxu0 0.0
    %76 = vmatprep.subr.mxu0 0.0
    %77 = vmatpush1.msra.mxu0 0.0
    %78 = vmatprep.subr.mxu0 0.0
    %79 = vmatpush1.msra.mxu0 0.0
    %80 = vmatprep.subr.mxu0 0.0
    %81 = vmatpush1.msra.mxu0 0.0
    %82 = vmatprep.subr.mxu0 0.0
    %83 = vmatpush1.msra.mxu0 0.0
    %84 = vmatprep.subr.mxu0 0.0
    %85 = vmatpush1.msra.mxu0 0.0
    %86 = vmatprep.subr.mxu0 0.0
    %87 = vmatpush1.msra.mxu0 0.0
    %88 = vmatprep.subr.mxu0 0.0
    %89 = vmatpush1.msra.mxu0 0.0
    %90 = vmatprep.subr.mxu0 0.0
    %91 = vmatpush1.msra.mxu0 0.0
    %92 = vmatprep.subr.mxu0 0.0
    %93 = vmatpush1.msra.mxu0 0.0
    %94 = vmatprep.subr.mxu0 0.0
    %95 = vmatpush1.msra.mxu0 0.0
    %96 = vmatprep.mubr.f32.mxu0 0.0
    %97 = vmatmul.mubr.f32.gmra.mrb[0].mxu0 %v30
    %v98 = vpop.f32.mrb[0].mxu0
    %v99 = vadd.f32 %v27, %v98
    %v100 = vpop.f32.mrb[0].mxu0
    %v101 = vadd.f32 %v27, %v100
    %102 = vdwg.mxu0
    %v103 = vmax.f32 %v99, 0.0
    %v104 = vmax.f32 %v101, 0.0
    %v105 = vld [vmem:[%s2 + $0x8] sm:$0xff]
    %107 = vset.pattern.permute.xlu0 8
    %108 = vperm.xlu0 %107, %v105
    %v109 = vpop.permute.xlu0 %108
    %vm111 = vcmask 64512
    %v112 = vsel %vm111, %v105, 0
    %114 = vmatprep.subr.mxu0 %v104
    %115 = vmatpush1.msra.mxu0 %v103
    %116 = vmatprep.subr.mxu0 0.0
    %117 = vmatpush1.msra.mxu0 0.0
    %118 = vmatprep.subr.mxu0 0.0
    %119 = vmatpush1.msra.mxu0 0.0
    %120 = vmatprep.subr.mxu0 0.0
    %121 = vmatpush1.msra.mxu0 0.0
    %122 = vmatprep.subr.mxu0 0.0
    %123 = vmatpush1.msra.mxu0 0.0
    %124 = vmatprep.subr.mxu0 0.0
    %125 = vmatpush1.msra.mxu0 0.0
    %126 = vmatprep.subr.mxu0 0.0
    %127 = vmatpush1.msra.mxu0 0.0
    %128 = vmatprep.subr.mxu0 0.0
    %129 = vmatpush1.msra.mxu0 0.0
    %130 = vmatprep.subr.mxu0 0.0
    %131 = vmatpush1.msra.mxu0 0.0
    %132 = vmatprep.subr.mxu0 0.0
    %133 = vmatpush1.msra.mxu0 0.0
    %134 = vmatprep.subr.mxu0 0.0
    %135 = vmatpush1.msra.mxu0 0.0
    %136 = vmatprep.subr.mxu0 0.0
    %137 = vmatpush1.msra.mxu0 0.0
    %138 = vmatprep.subr.mxu0 0.0
    %139 = vmatpush1.msra.mxu0 0.0
    %140 = vmatprep.subr.mxu0 0.0
    %141 = vmatpush1.msra.mxu0 0.0
    %142 = vmatprep.subr.mxu0 0.0
    %143 = vmatpush1.msra.mxu0 0.0
    %144 = vmatprep.subr.mxu0 0.0
    %145 = vmatpush1.msra.mxu0 0.0
    %146 = vmatprep.subr.mxu0 0.0
    %147 = vmatpush1.msra.mxu0 0.0
    %148 = vmatprep.subr.mxu0 0.0
    %149 = vmatpush1.msra.mxu0 0.0
    %150 = vmatprep.subr.mxu0 0.0
    %151 = vmatpush1.msra.mxu0 0.0
    %152 = vmatprep.subr.mxu0 0.0
    %153 = vmatpush1.msra.mxu0 0.0
    %154 = vmatprep.subr.mxu0 0.0
    %155 = vmatpush1.msra.mxu0 0.0
    %156 = vmatprep.subr.mxu0 0.0
    %157 = vmatpush1.msra.mxu0 0.0
    %158 = vmatprep.subr.mxu0 0.0
    %159 = vmatpush1.msra.mxu0 0.0
    %160 = vmatprep.subr.mxu0 0.0
    %161 = vmatpush1.msra.mxu0 0.0
    %162 = vmatprep.subr.mxu0 0.0
    %163 = vmatpush1.msra.mxu0 0.0
    %164 = vmatprep.subr.mxu0 0.0
    %165 = vmatpush1.msra.mxu0 0.0
    %166 = vmatprep.subr.mxu0 0.0
    %167 = vmatpush1.msra.mxu0 0.0
    %168 = vmatprep.subr.mxu0 0.0
    %169 = vmatpush1.msra.mxu0 0.0
    %170 = vmatprep.subr.mxu0 0.0
    %171 = vmatpush1.msra.mxu0 0.0
    %172 = vmatprep.subr.mxu0 0.0
    %173 = vmatpush1.msra.mxu0 0.0
    %174 = vmatprep.subr.mxu0 0.0
    %175 = vmatpush1.msra.mxu0 0.0
    %176 = vmatprep.subr.mxu0 0.0
    %177 = vmatpush1.msra.mxu0 0.0
    %178 = vmatprep.mubr.f32.mxu0 0.0
    %179 = vmatmul.mubr.f32.gmra.mrb[0].mxu0 %v112
    %v180 = vpop.f32.mrb[0].mxu0
    %v181 = vadd.f32 %v109, %v180
    %v182 = vpop.f32.mrb[0].mxu0
    %v183 = vadd.f32 %v109, %v182
    %184 = vdwg.mxu0
    %v185 = vmax.f32 %v181, 0.0
    %v186 = vmax.f32 %v183, 0.0
    %v187 = vld [vmem:[%s2 + $0x10] sm:$0xff]
    %189 = vset.pattern.permute.xlu0 8
    %190 = vperm.xlu0 %189, %v187
    %v191 = vpop.permute.xlu0 %190
    %v193 = vsel %vm111, %v187, 0
    %195 = vmatprep.subr.mxu0 %v186
    %196 = vmatpush1.msra.mxu0 %v185
    %197 = vmatprep.subr.mxu0 0.0
    %198 = vmatpush1.msra.mxu0 0.0
    %199 = vmatprep.subr.mxu0 0.0
    %200 = vmatpush1.msra.mxu0 0.0
    %201 = vmatprep.subr.mxu0 0.0
    %202 = vmatpush1.msra.mxu0 0.0
    %203 = vmatprep.subr.mxu0 0.0
    %204 = vmatpush1.msra.mxu0 0.0
    %205 = vmatprep.subr.mxu0 0.0
    %206 = vmatpush1.msra.mxu0 0.0
    %207 = vmatprep.subr.mxu0 0.0
    %208 = vmatpush1.msra.mxu0 0.0
    %209 = vmatprep.subr.mxu0 0.0
    %210 = vmatpush1.msra.mxu0 0.0
    %211 = vmatprep.subr.mxu0 0.0
    %212 = vmatpush1.msra.mxu0 0.0
    %213 = vmatprep.subr.mxu0 0.0
    %214 = vmatpush1.msra.mxu0 0.0
    %215 = vmatprep.subr.mxu0 0.0
    %216 = vmatpush1.msra.mxu0 0.0
    %217 = vmatprep.subr.mxu0 0.0
    %218 = vmatpush1.msra.mxu0 0.0
    %219 = vmatprep.subr.mxu0 0.0
    %220 = vmatpush1.msra.mxu0 0.0
    %221 = vmatprep.subr.mxu0 0.0
    %222 = vmatpush1.msra.mxu0 0.0
    %223 = vmatprep.subr.mxu0 0.0
    %224 = vmatpush1.msra.mxu0 0.0
    %225 = vmatprep.subr.mxu0 0.0
    %226 = vmatpush1.msra.mxu0 0.0
    %227 = vmatprep.subr.mxu0 0.0
    %228 = vmatpush1.msra.mxu0 0.0
    %229 = vmatprep.subr.mxu0 0.0
    %230 = vmatpush1.msra.mxu0 0.0
    %231 = vmatprep.subr.mxu0 0.0
    %232 = vmatpush1.msra.mxu0 0.0
    %233 = vmatprep.subr.mxu0 0.0
    %234 = vmatpush1.msra.mxu0 0.0
    %235 = vmatprep.subr.mxu0 0.0
    %236 = vmatpush1.msra.mxu0 0.0
    %237 = vmatprep.subr.mxu0 0.0
    %238 = vmatpush1.msra.mxu0 0.0
    %239 = vmatprep.subr.mxu0 0.0
    %240 = vmatpush1.msra.mxu0 0.0
    %241 = vmatprep.subr.mxu0 0.0
    %242 = vmatpush1.msra.mxu0 0.0
    %243 = vmatprep.subr.mxu0 0.0
    %244 = vmatpush1.msra.mxu0 0.0
    %245 = vmatprep.subr.mxu0 0.0
    %246 = vmatpush1.msra.mxu0 0.0
    %247 = vmatprep.subr.mxu0 0.0
    %248 = vmatpush1.msra.mxu0 0.0
    %249 = vmatprep.subr.mxu0 0.0
    %250 = vmatpush1.msra.mxu0 0.0
    %251 = vmatprep.subr.mxu0 0.0
    %252 = vmatpush1.msra.mxu0 0.0
    %253 = vmatprep.subr.mxu0 0.0
    %254 = vmatpush1.msra.mxu0 0.0
    %255 = vmatprep.subr.mxu0 0.0
    %256 = vmatpush1.msra.mxu0 0.0
    %257 = vmatprep.subr.mxu0 0.0
    %258 = vmatpush1.msra.mxu0 0.0
    %259 = vmatprep.mubr.f32.mxu0 0.0
    %260 = vmatmul.mubr.f32.gmra.mrb[0].mxu0 %v193
    %v261 = vpop.f32.mrb[0].mxu0
    %v262 = vadd.f32 %v191, %v261
    %v263 = vpop.f32.mrb[0].mxu0
    %v264 = vadd.f32 %v191, %v263
    %265 = vdwg.mxu0
    %v266 = vmax.f32 %v262, 0.0
    %v267 = vmax.f32 %v264, 0.0
    %v268 = vld [vmem:[%s2 + $0x18] sm:$0xff]
    %270 = vset.pattern.permute.xlu0 8
    %271 = vperm.xlu0 %270, %v268
    %v272 = vpop.permute.xlu0 %271
    %v274 = vsel %vm111, %v268, 0
    %276 = vmatprep.subr.mxu0 %v267
    %277 = vmatpush1.msra.mxu0 %v266
    %278 = vmatprep.subr.mxu0 0.0
    %279 = vmatpush1.msra.mxu0 0.0
    %280 = vmatprep.subr.mxu0 0.0
    %281 = vmatpush1.msra.mxu0 0.0
    %282 = vmatprep.subr.mxu0 0.0
    %283 = vmatpush1.msra.mxu0 0.0
    %284 = vmatprep.subr.mxu0 0.0
    %285 = vmatpush1.msra.mxu0 0.0
    %286 = vmatprep.subr.mxu0 0.0
    %287 = vmatpush1.msra.mxu0 0.0
    %288 = vmatprep.subr.mxu0 0.0
    %289 = vmatpush1.msra.mxu0 0.0
    %290 = vmatprep.subr.mxu0 0.0
    %291 = vmatpush1.msra.mxu0 0.0
    %292 = vmatprep.subr.mxu0 0.0
    %293 = vmatpush1.msra.mxu0 0.0
    %294 = vmatprep.subr.mxu0 0.0
    %295 = vmatpush1.msra.mxu0 0.0
    %296 = vmatprep.subr.mxu0 0.0
    %297 = vmatpush1.msra.mxu0 0.0
    %298 = vmatprep.subr.mxu0 0.0
    %299 = vmatpush1.msra.mxu0 0.0
    %300 = vmatprep.subr.mxu0 0.0
    %301 = vmatpush1.msra.mxu0 0.0
    %302 = vmatprep.subr.mxu0 0.0
    %303 = vmatpush1.msra.mxu0 0.0
    %304 = vmatprep.subr.mxu0 0.0
    %305 = vmatpush1.msra.mxu0 0.0
    %306 = vmatprep.subr.mxu0 0.0
    %307 = vmatpush1.msra.mxu0 0.0
    %308 = vmatprep.subr.mxu0 0.0
    %309 = vmatpush1.msra.mxu0 0.0
    %310 = vmatprep.subr.mxu0 0.0
    %311 = vmatpush1.msra.mxu0 0.0
    %312 = vmatprep.subr.mxu0 0.0
    %313 = vmatpush1.msra.mxu0 0.0
    %314 = vmatprep.subr.mxu0 0.0
    %315 = vmatpush1.msra.mxu0 0.0
    %316 = vmatprep.subr.mxu0 0.0
    %317 = vmatpush1.msra.mxu0 0.0
    %318 = vmatprep.subr.mxu0 0.0
    %319 = vmatpush1.msra.mxu0 0.0
    %320 = vmatprep.subr.mxu0 0.0
    %321 = vmatpush1.msra.mxu0 0.0
    %322 = vmatprep.subr.mxu0 0.0
    %323 = vmatpush1.msra.mxu0 0.0
    %324 = vmatprep.subr.mxu0 0.0
    %325 = vmatpush1.msra.mxu0 0.0
    %326 = vmatprep.subr.mxu0 0.0
    %327 = vmatpush1.msra.mxu0 0.0
    %328 = vmatprep.subr.mxu0 0.0
    %329 = vmatpush1.msra.mxu0 0.0
    %330 = vmatprep.subr.mxu0 0.0
    %331 = vmatpush1.msra.mxu0 0.0
    %332 = vmatprep.subr.mxu0 0.0
    %333 = vmatpush1.msra.mxu0 0.0
    %334 = vmatprep.subr.mxu0 0.0
    %335 = vmatpush1.msra.mxu0 0.0
    %336 = vmatprep.subr.mxu0 0.0
    %337 = vmatpush1.msra.mxu0 0.0
    %338 = vmatprep.subr.mxu0 0.0
    %339 = vmatpush1.msra.mxu0 0.0
    %340 = vmatprep.mubr.f32.mxu0 0.0
    %341 = vmatmul.mubr.f32.gmra.mrb[0].mxu0 %v274
    %v342 = vpop.f32.mrb[0].mxu0
    %v343 = vadd.f32 %v272, %v342
    %v344 = vpop.f32.mrb[0].mxu0
    %v345 = vadd.f32 %v272, %v344
    %346 = vdwg.mxu0
    %v347 = vmax.f32 %v343, 0.0
    %v348 = vmax.f32 %v345, 0.0
    %v349 = vld [vmem:[%s2 + $0x20] sm:$0xff]
    %351 = vset.pattern.permute.xlu0 8
    %352 = vperm.xlu0 %351, %v349
    %v353 = vpop.permute.xlu0 %352
    %v355 = vsel %vm111, %v349, 0
    %357 = vmatprep.subr.mxu0 %v348
    %358 = vmatpush1.msra.mxu0 %v347
    %359 = vmatprep.subr.mxu0 0.0
    %360 = vmatpush1.msra.mxu0 0.0
    %361 = vmatprep.subr.mxu0 0.0
    %362 = vmatpush1.msra.mxu0 0.0
    %363 = vmatprep.subr.mxu0 0.0
    %364 = vmatpush1.msra.mxu0 0.0
    %365 = vmatprep.subr.mxu0 0.0
    %366 = vmatpush1.msra.mxu0 0.0
    %367 = vmatprep.subr.mxu0 0.0
    %368 = vmatpush1.msra.mxu0 0.0
    %369 = vmatprep.subr.mxu0 0.0
    %370 = vmatpush1.msra.mxu0 0.0
    %371 = vmatprep.subr.mxu0 0.0
    %372 = vmatpush1.msra.mxu0 0.0
    %373 = vmatprep.subr.mxu0 0.0
    %374 = vmatpush1.msra.mxu0 0.0
    %375 = vmatprep.subr.mxu0 0.0
    %376 = vmatpush1.msra.mxu0 0.0
    %377 = vmatprep.subr.mxu0 0.0
    %378 = vmatpush1.msra.mxu0 0.0
    %379 = vmatprep.subr.mxu0 0.0
    %380 = vmatpush1.msra.mxu0 0.0
    %381 = vmatprep.subr.mxu0 0.0
    %382 = vmatpush1.msra.mxu0 0.0
    %383 = vmatprep.subr.mxu0 0.0
    %384 = vmatpush1.msra.mxu0 0.0
    %385 = vmatprep.subr.mxu0 0.0
    %386 = vmatpush1.msra.mxu0 0.0
    %387 = vmatprep.subr.mxu0 0.0
    %388 = vmatpush1.msra.mxu0 0.0
    %389 = vmatprep.subr.mxu0 0.0
    %390 = vmatpush1.msra.mxu0 0.0
    %391 = vmatprep.subr.mxu0 0.0
    %392 = vmatpush1.msra.mxu0 0.0
    %393 = vmatprep.subr.mxu0 0.0
    %394 = vmatpush1.msra.mxu0 0.0
    %395 = vmatprep.subr.mxu0 0.0
    %396 = vmatpush1.msra.mxu0 0.0
    %397 = vmatprep.subr.mxu0 0.0
    %398 = vmatpush1.msra.mxu0 0.0
    %399 = vmatprep.subr.mxu0 0.0
    %400 = vmatpush1.msra.mxu0 0.0
    %401 = vmatprep.subr.mxu0 0.0
    %402 = vmatpush1.msra.mxu0 0.0
    %403 = vmatprep.subr.mxu0 0.0
    %404 = vmatpush1.msra.mxu0 0.0
    %405 = vmatprep.subr.mxu0 0.0
    %406 = vmatpush1.msra.mxu0 0.0
    %407 = vmatprep.subr.mxu0 0.0
    %408 = vmatpush1.msra.mxu0 0.0
    %409 = vmatprep.subr.mxu0 0.0
    %410 = vmatpush1.msra.mxu0 0.0
    %411 = vmatprep.subr.mxu0 0.0
    %412 = vmatpush1.msra.mxu0 0.0
    %413 = vmatprep.subr.mxu0 0.0
    %414 = vmatpush1.msra.mxu0 0.0
    %415 = vmatprep.subr.mxu0 0.0
    %416 = vmatpush1.msra.mxu0 0.0
    %417 = vmatprep.subr.mxu0 0.0
    %418 = vmatpush1.msra.mxu0 0.0
    %419 = vmatprep.subr.mxu0 0.0
    %420 = vmatpush1.msra.mxu0 0.0
    %421 = vmatprep.mubr.f32.mxu0 0.0
    %422 = vmatmul.mubr.f32.gmra.mrb[0].mxu0 %v355
    %v423 = vpop.f32.mrb[0].mxu0
    %v424 = vadd.f32 %v353, %v423
    %v425 = vpop.f32.mrb[0].mxu0
    %v426 = vadd.f32 %v353, %v425
    %427 = vdwg.mxu0
    %v428 = vmax.f32 %v424, 0.0
    %v429 = vmax.f32 %v426, 0.0
    %v430 = vld [vmem:[%s2 + $0x28] sm:$0xff]
    %432 = vset.pattern.permute.xlu0 8
    %433 = vperm.xlu0 %432, %v430
    %v434 = vpop.permute.xlu0 %433
    %v436 = vsel %vm111, %v430, 0
    %438 = vmatprep.subr.mxu0 %v429
    %439 = vmatpush1.msra.mxu0 %v428
    %440 = vmatprep.subr.mxu0 0.0
    %441 = vmatpush1.msra.mxu0 0.0
    %442 = vmatprep.subr.mxu0 0.0
    %443 = vmatpush1.msra.mxu0 0.0
    %444 = vmatprep.subr.mxu0 0.0
    %445 = vmatpush1.msra.mxu0 0.0
    %446 = vmatprep.subr.mxu0 0.0
    %447 = vmatpush1.msra.mxu0 0.0
    %448 = vmatprep.subr.mxu0 0.0
    %449 = vmatpush1.msra.mxu0 0.0
    %450 = vmatprep.subr.mxu0 0.0
    %451 = vmatpush1.msra.mxu0 0.0
    %452 = vmatprep.subr.mxu0 0.0
    %453 = vmatpush1.msra.mxu0 0.0
    %454 = vmatprep.subr.mxu0 0.0
    %455 = vmatpush1.msra.mxu0 0.0
    %456 = vmatprep.subr.mxu0 0.0
    %457 = vmatpush1.msra.mxu0 0.0
    %458 = vmatprep.subr.mxu0 0.0
    %459 = vmatpush1.msra.mxu0 0.0
    %460 = vmatprep.subr.mxu0 0.0
    %461 = vmatpush1.msra.mxu0 0.0
    %462 = vmatprep.subr.mxu0 0.0
    %463 = vmatpush1.msra.mxu0 0.0
    %464 = vmatprep.subr.mxu0 0.0
    %465 = vmatpush1.msra.mxu0 0.0
    %466 = vmatprep.subr.mxu0 0.0
    %467 = vmatpush1.msra.mxu0 0.0
    %468 = vmatprep.subr.mxu0 0.0
    %469 = vmatpush1.msra.mxu0 0.0
    %470 = vmatprep.subr.mxu0 0.0
    %471 = vmatpush1.msra.mxu0 0.0
    %472 = vmatprep.subr.mxu0 0.0
    %473 = vmatpush1.msra.mxu0 0.0
    %474 = vmatprep.subr.mxu0 0.0
    %475 = vmatpush1.msra.mxu0 0.0
    %476 = vmatprep.subr.mxu0 0.0
    %477 = vmatpush1.msra.mxu0 0.0
    %478 = vmatprep.subr.mxu0 0.0
    %479 = vmatpush1.msra.mxu0 0.0
    %480 = vmatprep.subr.mxu0 0.0
    %481 = vmatpush1.msra.mxu0 0.0
    %482 = vmatprep.subr.mxu0 0.0
    %483 = vmatpush1.msra.mxu0 0.0
    %484 = vmatprep.subr.mxu0 0.0
    %485 = vmatpush1.msra.mxu0 0.0
    %486 = vmatprep.subr.mxu0 0.0
    %487 = vmatpush1.msra.mxu0 0.0
    %488 = vmatprep.subr.mxu0 0.0
    %489 = vmatpush1.msra.mxu0 0.0
    %490 = vmatprep.subr.mxu0 0.0
    %491 = vmatpush1.msra.mxu0 0.0
    %492 = vmatprep.subr.mxu0 0.0
    %493 = vmatpush1.msra.mxu0 0.0
    %494 = vmatprep.subr.mxu0 0.0
    %495 = vmatpush1.msra.mxu0 0.0
    %496 = vmatprep.subr.mxu0 0.0
    %497 = vmatpush1.msra.mxu0 0.0
    %498 = vmatprep.subr.mxu0 0.0
    %499 = vmatpush1.msra.mxu0 0.0
    %500 = vmatprep.subr.mxu0 0.0
    %501 = vmatpush1.msra.mxu0 0.0
    %502 = vmatprep.mubr.f32.mxu0 0.0
    %503 = vmatmul.mubr.f32.gmra.mrb[0].mxu0 %v436
    %v504 = vpop.f32.mrb[0].mxu0
    %v505 = vadd.f32 %v434, %v504
    %v506 = vpop.f32.mrb[0].mxu0
    %v507 = vadd.f32 %v434, %v506
    %508 = vdwg.mxu0
    %v509 = vmax.f32 %v505, 0.0
    %v510 = vmax.f32 %v507, 0.0
    %v511 = vld [vmem:[%s2 + $0x30] sm:$0xff]
    %513 = vset.pattern.permute.xlu0 8
    %514 = vperm.xlu0 %513, %v511
    %v515 = vpop.permute.xlu0 %514
    %v517 = vsel %vm111, %v511, 0
    %519 = vmatprep.subr.mxu0 %v510
    %520 = vmatpush1.msra.mxu0 %v509
    %521 = vmatprep.subr.mxu0 0.0
    %522 = vmatpush1.msra.mxu0 0.0
    %523 = vmatprep.subr.mxu0 0.0
    %524 = vmatpush1.msra.mxu0 0.0
    %525 = vmatprep.subr.mxu0 0.0
    %526 = vmatpush1.msra.mxu0 0.0
    %527 = vmatprep.subr.mxu0 0.0
    %528 = vmatpush1.msra.mxu0 0.0
    %529 = vmatprep.subr.mxu0 0.0
    %530 = vmatpush1.msra.mxu0 0.0
    %531 = vmatprep.subr.mxu0 0.0
    %532 = vmatpush1.msra.mxu0 0.0
    %533 = vmatprep.subr.mxu0 0.0
    %534 = vmatpush1.msra.mxu0 0.0
    %535 = vmatprep.subr.mxu0 0.0
    %536 = vmatpush1.msra.mxu0 0.0
    %537 = vmatprep.subr.mxu0 0.0
    %538 = vmatpush1.msra.mxu0 0.0
    %539 = vmatprep.subr.mxu0 0.0
    %540 = vmatpush1.msra.mxu0 0.0
    %541 = vmatprep.subr.mxu0 0.0
    %542 = vmatpush1.msra.mxu0 0.0
    %543 = vmatprep.subr.mxu0 0.0
    %544 = vmatpush1.msra.mxu0 0.0
    %545 = vmatprep.subr.mxu0 0.0
    %546 = vmatpush1.msra.mxu0 0.0
    %547 = vmatprep.subr.mxu0 0.0
    %548 = vmatpush1.msra.mxu0 0.0
    %549 = vmatprep.subr.mxu0 0.0
    %550 = vmatpush1.msra.mxu0 0.0
    %551 = vmatprep.subr.mxu0 0.0
    %552 = vmatpush1.msra.mxu0 0.0
    %553 = vmatprep.subr.mxu0 0.0
    %554 = vmatpush1.msra.mxu0 0.0
    %555 = vmatprep.subr.mxu0 0.0
    %556 = vmatpush1.msra.mxu0 0.0
    %557 = vmatprep.subr.mxu0 0.0
    %558 = vmatpush1.msra.mxu0 0.0
    %559 = vmatprep.subr.mxu0 0.0
    %560 = vmatpush1.msra.mxu0 0.0
    %561 = vmatprep.subr.mxu0 0.0
    %562 = vmatpush1.msra.mxu0 0.0
    %563 = vmatprep.subr.mxu0 0.0
    %564 = vmatpush1.msra.mxu0 0.0
    %565 = vmatprep.subr.mxu0 0.0
    %566 = vmatpush1.msra.mxu0 0.0
    %567 = vmatprep.subr.mxu0 0.0
    %568 = vmatpush1.msra.mxu0 0.0
    %569 = vmatprep.subr.mxu0 0.0
    %570 = vmatpush1.msra.mxu0 0.0
    %571 = vmatprep.subr.mxu0 0.0
    %572 = vmatpush1.msra.mxu0 0.0
    %573 = vmatprep.subr.mxu0 0.0
    %574 = vmatpush1.msra.mxu0 0.0
    %575 = vmatprep.subr.mxu0 0.0
    %576 = vmatpush1.msra.mxu0 0.0
    %577 = vmatprep.subr.mxu0 0.0
    %578 = vmatpush1.msra.mxu0 0.0
    %579 = vmatprep.subr.mxu0 0.0
    %580 = vmatpush1.msra.mxu0 0.0
    %581 = vmatprep.subr.mxu0 0.0
    %582 = vmatpush1.msra.mxu0 0.0
    %583 = vmatprep.mubr.f32.mxu0 0.0
    %584 = vmatmul.mubr.f32.gmra.mrb[0].mxu0 %v517
    %v585 = vpop.f32.mrb[0].mxu0
    %v586 = vadd.f32 %v515, %v585
    %v587 = vpop.f32.mrb[0].mxu0
    %v588 = vadd.f32 %v515, %v587
    %589 = vdwg.mxu0
    %v590 = vmax.f32 %v586, 0.0
    %v591 = vmax.f32 %v588, 0.0
    %v592 = vld [vmem:[%s2 + $0x38] sm:$0xff]
    %594 = vset.pattern.permute.xlu0 8
    %595 = vperm.xlu0 %594, %v592
    %v596 = vpop.permute.xlu0 %595
    %v598 = vsel %vm111, %v592, 0
    %600 = vmatprep.subr.mxu0 %v591
    %601 = vmatpush1.msra.mxu0 %v590
    %602 = vmatprep.subr.mxu0 0.0
    %603 = vmatpush1.msra.mxu0 0.0
    %604 = vmatprep.subr.mxu0 0.0
    %605 = vmatpush1.msra.mxu0 0.0
    %606 = vmatprep.subr.mxu0 0.0
    %607 = vmatpush1.msra.mxu0 0.0
    %608 = vmatprep.subr.mxu0 0.0
    %609 = vmatpush1.msra.mxu0 0.0
    %610 = vmatprep.subr.mxu0 0.0
    %611 = vmatpush1.msra.mxu0 0.0
    %612 = vmatprep.subr.mxu0 0.0
    %613 = vmatpush1.msra.mxu0 0.0
    %614 = vmatprep.subr.mxu0 0.0
    %615 = vmatpush1.msra.mxu0 0.0
    %616 = vmatprep.subr.mxu0 0.0
    %617 = vmatpush1.msra.mxu0 0.0
    %618 = vmatprep.subr.mxu0 0.0
    %619 = vmatpush1.msra.mxu0 0.0
    %620 = vmatprep.subr.mxu0 0.0
    %621 = vmatpush1.msra.mxu0 0.0
    %622 = vmatprep.subr.mxu0 0.0
    %623 = vmatpush1.msra.mxu0 0.0
    %624 = vmatprep.subr.mxu0 0.0
    %625 = vmatpush1.msra.mxu0 0.0
    %626 = vmatprep.subr.mxu0 0.0
    %627 = vmatpush1.msra.mxu0 0.0
    %628 = vmatprep.subr.mxu0 0.0
    %629 = vmatpush1.msra.mxu0 0.0
    %630 = vmatprep.subr.mxu0 0.0
    %631 = vmatpush1.msra.mxu0 0.0
    %632 = vmatprep.subr.mxu0 0.0
    %633 = vmatpush1.msra.mxu0 0.0
    %634 = vmatprep.subr.mxu0 0.0
    %635 = vmatpush1.msra.mxu0 0.0
    %636 = vmatprep.subr.mxu0 0.0
    %637 = vmatpush1.msra.mxu0 0.0
    %638 = vmatprep.subr.mxu0 0.0
    %639 = vmatpush1.msra.mxu0 0.0
    %640 = vmatprep.subr.mxu0 0.0
    %641 = vmatpush1.msra.mxu0 0.0
    %642 = vmatprep.subr.mxu0 0.0
    %643 = vmatpush1.msra.mxu0 0.0
    %644 = vmatprep.subr.mxu0 0.0
    %645 = vmatpush1.msra.mxu0 0.0
    %646 = vmatprep.subr.mxu0 0.0
    %647 = vmatpush1.msra.mxu0 0.0
    %648 = vmatprep.subr.mxu0 0.0
    %649 = vmatpush1.msra.mxu0 0.0
    %650 = vmatprep.subr.mxu0 0.0
    %651 = vmatpush1.msra.mxu0 0.0
    %652 = vmatprep.subr.mxu0 0.0
    %653 = vmatpush1.msra.mxu0 0.0
    %654 = vmatprep.subr.mxu0 0.0
    %655 = vmatpush1.msra.mxu0 0.0
    %656 = vmatprep.subr.mxu0 0.0
    %657 = vmatpush1.msra.mxu0 0.0
    %658 = vmatprep.subr.mxu0 0.0
    %659 = vmatpush1.msra.mxu0 0.0
    %660 = vmatprep.subr.mxu0 0.0
    %661 = vmatpush1.msra.mxu0 0.0
    %662 = vmatprep.subr.mxu0 0.0
    %663 = vmatpush1.msra.mxu0 0.0
    %664 = vmatprep.mubr.f32.mxu0 0.0
    %665 = vmatmul.mubr.f32.gmra.mrb[0].mxu0 %v598
    %v666 = vpop.f32.mrb[0].mxu0
    %v667 = vadd.f32 %v596, %v666
    %v668 = vpop.f32.mrb[0].mxu0
    %v669 = vadd.f32 %v596, %v668
    %670 = vdwg.mxu0
    %v671 = vmax.f32 %v667, 0.0
    %v672 = vmax.f32 %v669, 0.0
    %v673 = vld [vmem:[%s2 + $0x40] sm:$0x1]
    %675 = vset.pattern.permute.xlu0 8
    %676 = vperm.xlu0 %675, %v673
    %v677 = vpop.permute.xlu0 %676
    %v679 = vsel %vm111, %v673, 0
    %681 = vmatprep.subr.mxu0 %v672
    %682 = vmatpush1.msra.mxu0 %v671
    %683 = vmatprep.subr.mxu0 0.0
    %684 = vmatpush1.msra.mxu0 0.0
    %685 = vmatprep.subr.mxu0 0.0
    %686 = vmatpush1.msra.mxu0 0.0
    %687 = vmatprep.subr.mxu0 0.0
    %688 = vmatpush1.msra.mxu0 0.0
    %689 = vmatprep.subr.mxu0 0.0
    %690 = vmatpush1.msra.mxu0 0.0
    %691 = vmatprep.subr.mxu0 0.0
    %692 = vmatpush1.msra.mxu0 0.0
    %693 = vmatprep.subr.mxu0 0.0
    %694 = vmatpush1.msra.mxu0 0.0
    %695 = vmatprep.subr.mxu0 0.0
    %696 = vmatpush1.msra.mxu0 0.0
    %697 = vmatprep.subr.mxu0 0.0
    %698 = vmatpush1.msra.mxu0 0.0
    %699 = vmatprep.subr.mxu0 0.0
    %700 = vmatpush1.msra.mxu0 0.0
    %701 = vmatprep.subr.mxu0 0.0
    %702 = vmatpush1.msra.mxu0 0.0
    %703 = vmatprep.subr.mxu0 0.0
    %704 = vmatpush1.msra.mxu0 0.0
    %705 = vmatprep.subr.mxu0 0.0
    %706 = vmatpush1.msra.mxu0 0.0
    %707 = vmatprep.subr.mxu0 0.0
    %708 = vmatpush1.msra.mxu0 0.0
    %709 = vmatprep.subr.mxu0 0.0
    %710 = vmatpush1.msra.mxu0 0.0
    %711 = vmatprep.subr.mxu0 0.0
    %712 = vmatpush1.msra.mxu0 0.0
    %713 = vmatprep.subr.mxu0 0.0
    %714 = vmatpush1.msra.mxu0 0.0
    %715 = vmatprep.subr.mxu0 0.0
    %716 = vmatpush1.msra.mxu0 0.0
    %717 = vmatprep.subr.mxu0 0.0
    %718 = vmatpush1.msra.mxu0 0.0
    %719 = vmatprep.subr.mxu0 0.0
    %720 = vmatpush1.msra.mxu0 0.0
    %721 = vmatprep.subr.mxu0 0.0
    %722 = vmatpush1.msra.mxu0 0.0
    %723 = vmatprep.subr.mxu0 0.0
    %724 = vmatpush1.msra.mxu0 0.0
    %725 = vmatprep.subr.mxu0 0.0
    %726 = vmatpush1.msra.mxu0 0.0
    %727 = vmatprep.subr.mxu0 0.0
    %728 = vmatpush1.msra.mxu0 0.0
    %729 = vmatprep.subr.mxu0 0.0
    %730 = vmatpush1.msra.mxu0 0.0
    %731 = vmatprep.subr.mxu0 0.0
    %732 = vmatpush1.msra.mxu0 0.0
    %733 = vmatprep.subr.mxu0 0.0
    %734 = vmatpush1.msra.mxu0 0.0
    %735 = vmatprep.subr.mxu0 0.0
    %736 = vmatpush1.msra.mxu0 0.0
    %737 = vmatprep.subr.mxu0 0.0
    %738 = vmatpush1.msra.mxu0 0.0
    %739 = vmatprep.subr.mxu0 0.0
    %740 = vmatpush1.msra.mxu0 0.0
    %741 = vmatprep.subr.mxu0 0.0
    %742 = vmatpush1.msra.mxu0 0.0
    %743 = vmatprep.subr.mxu0 0.0
    %744 = vmatpush1.msra.mxu0 0.0
    %745 = vmatprep.mubr.f32.mxu0 0.0
    %746 = vmatmul.mubr.f32.gmra.mrb[0].mxu0 %v679
    %v747 = vpop.f32.mrb[0].mxu0
    %v748 = vadd.f32 %v677, %v747
    %v749 = vpop.f32.mrb[0].mxu0
    %v750 = vadd.f32 %v677, %v749
    %751 = vdwg.mxu0
    %v752 = vld [vmem:[%s2 + $0x41] sm:$0x1]
    %v753 = vlaneseq
    %v754 = vshrl.u32 %v753, 7
    %v755 = vadd.s32 %v754, 8
    %v756 = vld [vmem:[%s1] sm:$0x3]
    %v757 = vlaneseq
    %v758 = vshrl.u32 %v757, 7
    %v759 = vsub.s32 0, %v758
    %v760 = vrot.slane %v756, %v759
    %v761 = vlaneseq
    %v762 = vshrl.u32 %v761, 7
    %v763 = vsub.s32 1, %v762
    %v764 = vrot.slane %v756, %v763
    %vm765 = vcmp.eq.s32.totalorder %v754, %v760
    %vm766 = vcmp.eq.s32.totalorder %v754, %v764
    %vm767 = vcmp.eq.s32.totalorder %v755, %v760
    %vm768 = vcmp.eq.s32.totalorder %v755, %v764
    %v769 = vsel %vm765, 1, 0
    %v770 = vsel %vm766, 1, 0
    %v771 = vsel %vm767, 1, 0
    %v772 = vsel %vm768, 1, 0
    %v773 = vcvt.s32.f32 %v769
    %v774 = vcvt.s32.f32 %v770
    %v775 = vcvt.s32.f32 %v771
    %v776 = vcvt.s32.f32 %v772
    %vm777 = vcmask 80896
    %v779 = vsel %vm777, %v752, 0
    %vm781 = vcmask 1041408
    %v783 = vsel %vm781, %v775, 0
    %v786 = vsel %vm781, %v776, 0
    %788 = vmatprep.subr.mxu0 %v774
    %789 = vmatpush1.msra.mxu0 %v773
    %790 = vmatprep.subr.mxu0 %v786
    %791 = vmatpush1.msra.mxu0 %v783
    %792 = vmatprep.subr.mxu0 0.0
    %793 = vmatpush1.msra.mxu0 0.0
    %794 = vmatprep.subr.mxu0 0.0
    %795 = vmatpush1.msra.mxu0 0.0
    %796 = vmatprep.subr.mxu0 0.0
    %797 = vmatpush1.msra.mxu0 0.0
    %798 = vmatprep.subr.mxu0 0.0
    %799 = vmatpush1.msra.mxu0 0.0
    %800 = vmatprep.subr.mxu0 0.0
    %801 = vmatpush1.msra.mxu0 0.0
    %802 = vmatprep.subr.mxu0 0.0
    %803 = vmatpush1.msra.mxu0 0.0
    %804 = vmatprep.subr.mxu0 0.0
    %805 = vmatpush1.msra.mxu0 0.0
    %806 = vmatprep.subr.mxu0 0.0
    %807 = vmatpush1.msra.mxu0 0.0
    %808 = vmatprep.subr.mxu0 0.0
    %809 = vmatpush1.msra.mxu0 0.0
    %810 = vmatprep.subr.mxu0 0.0
    %811 = vmatpush1.msra.mxu0 0.0
    %812 = vmatprep.subr.mxu0 0.0
    %813 = vmatpush1.msra.mxu0 0.0
    %814 = vmatprep.subr.mxu0 0.0
    %815 = vmatpush1.msra.mxu0 0.0
    %816 = vmatprep.subr.mxu0 0.0
    %817 = vmatpush1.msra.mxu0 0.0
    %818 = vmatprep.subr.mxu0 0.0
    %819 = vmatpush1.msra.mxu0 0.0
    %820 = vmatprep.subr.mxu0 0.0
    %821 = vmatpush1.msra.mxu0 0.0
    %822 = vmatprep.subr.mxu0 0.0
    %823 = vmatpush1.msra.mxu0 0.0
    %824 = vmatprep.subr.mxu0 0.0
    %825 = vmatpush1.msra.mxu0 0.0
    %826 = vmatprep.subr.mxu0 0.0
    %827 = vmatpush1.msra.mxu0 0.0
    %828 = vmatprep.subr.mxu0 0.0
    %829 = vmatpush1.msra.mxu0 0.0
    %830 = vmatprep.subr.mxu0 0.0
    %831 = vmatpush1.msra.mxu0 0.0
    %832 = vmatprep.subr.mxu0 0.0
    %833 = vmatpush1.msra.mxu0 0.0
    %834 = vmatprep.subr.mxu0 0.0
    %835 = vmatpush1.msra.mxu0 0.0
    %836 = vmatprep.subr.mxu0 0.0
    %837 = vmatpush1.msra.mxu0 0.0
    %838 = vmatprep.subr.mxu0 0.0
    %839 = vmatpush1.msra.mxu0 0.0
    %840 = vmatprep.subr.mxu0 0.0
    %841 = vmatpush1.msra.mxu0 0.0
    %842 = vmatprep.subr.mxu0 0.0
    %843 = vmatpush1.msra.mxu0 0.0
    %844 = vmatprep.subr.mxu0 0.0
    %845 = vmatpush1.msra.mxu0 0.0
    %846 = vmatprep.subr.mxu0 0.0
    %847 = vmatpush1.msra.mxu0 0.0
    %848 = vmatprep.subr.mxu0 0.0
    %849 = vmatpush1.msra.mxu0 0.0
    %850 = vmatprep.subr.mxu0 0.0
    %851 = vmatpush1.msra.mxu0 0.0
    %852 = vmatprep.mubr.f32.mxu0 0.0
    %853 = vmatmul.mubr.f32.gmra.mrb[0].mxu0 %v779
    %v854 = vpop.f32.mrb[0].mxu0
    %v855 = vadd.f32 0.0, %v854
    %v856 = vpop.f32.mrb[0].mxu0
    %v857 = vadd.f32 0.0, %v856
    %858 = vdwg.mxu0
    %v859 = vadd.f32 %v748, %v855
    %v860 = vadd.f32 %v750, %v857
    %v863 = vcombine.low %v859, %v860
    %v865 = vunpack.c.l.s4 1966171168
    %v866 = vunpack.c.0.s8 %v865
    %v867 = vlaneseq
    %v868 = vshrl.u32 %v867, 7
    %v869 = vsub.s32 %v866, %v868
    %v870 = vrot.slane %v863, %v869
    %v872 = vunpack.c.l.s4 1966171168
    %v873 = vunpack.c.0.s8 %v872
    %v874 = vlaneseq
    %v875 = vshrl.u32 %v874, 7
    %v876 = vsub.s32 %v873, %v875
    %v877 = vrot.slane %v870, %v876
    %v879 = vlaneseq
    %vm880 = vcmp.ge.s32.totalorder %v879, 0
    %vm881 = vcmp.lt.s32.totalorder %v879, 256
    %vm882 = vmand %vm880, %vm881
    %883 = vst.msk [vmem:[#allocation2] sm:$0x3] %vm882, %v877
    // Predicated region
    $region14: #{mention_scores.1} parent=1 // pred_check
      _
    $region15: #{mention_scores.1} parent=1 // pred_check_branch
      %885 = sbr.rel (0) target = $region17
    $region16: #{mention_scores.1} parent=1 // pred_region
      %s887 = ssub.s32 32, 32
      %888 = vsyncadd [#allocation3], %s887
      %s890 = sshll.u32 [#allocation2], 4
      %s891 = int_to_ptr.vmem [resolvable:$true] %s890
      %893 = dma.vmem_to_hbm [thread:$0]  %s891, 32, %s3, [#allocation3]
    $region17: #{mention_scores.1} parent=1 // pred_fallthru
      _
    // Predicated region
    $region18: #{mention_scores.1} parent=1 // pred_check
      _
    $region19: #{mention_scores.1} parent=1 // pred_check_branch
      %895 = sbr.rel (0) target = $region21
    $region20: #{mention_scores.1} parent=1 // pred_region
      %896 = dma.done [#allocation3], 32
    $region21: #{mention_scores.1} parent=1 // pred_fallthru
      _
    %897 = vsyncpa [#allocation3], 1

</llo_original>
